<compile_context>
chip_gen: v7x
topology: tpu7x:2x2x1
jax: 0.10.0
libtpu: 0.0.40
codegen_flags: <defaults>
</compile_context>

<pallas_src>
import jax
import jax.numpy as jnp
from jax.experimental import pallas as pl
from jax.experimental.pallas import tpu as pltpu

LANES = 128


def _round_up(x, m):
    return (x + m - 1) // m * m


def _make_kernel(C, tile_rows, R, ragged, do_fold):
    """Build the fused MvLoss reduction kernel (statics captured by closure)."""

    def kernel(o_ref, t_ref, out_ref, acc_ref):
        # o_ref, t_ref : (1, C, tile_rows, 128) VMEM input tiles
        # out_ref      : (1, 3, 128) f32 per-batch per-lane partial sums
        #   row 0: sum |target - output|                (over C*rows*lanes)
        #   row 1: sum |output[0] + output[1]|          (over rows*lanes)
        #   row 2: sum sqrt(sum_c (target - output)^2)  (over rows*lanes)
        # acc_ref      : (3, acc_rows, 128) f32 accumulator (persists over j)
        j = pl.program_id(1)

        @pl.when(j == 0)
        def _init():
            acc_ref[...] = jnp.zeros_like(acc_ref)

        o = o_ref[0].astype(jnp.float32)   # (C, tile_rows, 128)
        t = t_ref[0].astype(jnp.float32)

        if ragged:
            # Last row-tile overruns the array: mask stale rows before any
            # arithmetic so they contribute exactly 0 to every sum (and any
            # garbage/NaN bytes in the un-DMA'd region are never touched).
            rows = jax.lax.broadcasted_iota(jnp.int32, (tile_rows, LANES), 0)
            valid = (j * tile_rows + rows) < R
            o = jnp.where(valid, o, 0.0)
            t = jnp.where(valid, t, 0.0)

        diff = t - o
        l1 = jnp.sum(jnp.abs(diff), axis=0)            # (tile_rows, 128)
        fus = jnp.abs(o[0] + o[1])                     # (tile_rows, 128)
        epe = jnp.sqrt(jnp.sum(diff * diff, axis=0))   # (tile_rows, 128)

        def fold(x):
            # Fold rows down to 8 sublanes: leading-dim sum = pure VPU vreg
            # adds (no XLU), and only one accumulator store per metric/step.
            if do_fold:
                return x.reshape(tile_rows // 8, 8, LANES).sum(axis=0)
            return x

        acc_ref[0] += fold(l1)
        acc_ref[1] += fold(fus)
        acc_ref[2] += fold(epe)

        @pl.when(j == pl.num_programs(1) - 1)
        def _finalize():
            # Tiny epilogue: one sublane reduce of an (acc_rows,128) slab per
            # metric; the cross-lane reduce happens in the wrapper.
            for k in range(3):
                out_ref[0, k:k + 1, :] = jnp.sum(acc_ref[k], axis=0, keepdims=True)

    return kernel


def mv_loss(output, target, fusion_param=0.25, *, max_block_bytes=4 << 20):
    """JAX/Pallas equivalent of MvLoss.forward. Returns [lossvalue, epevalue]."""
    B, C, H, W = output.shape
    assert target.shape == output.shape
    assert output.dtype == target.dtype
    assert C >= 2, "fusion term needs at least 2 channels"

    itemsize = jnp.dtype(output.dtype).itemsize
    sublane = {4: 8, 2: 16, 1: 32}[itemsize]   # dtype-dependent packing multiple

    # ---- Layout: keep NCHW; the reshape below is free when H*W % 128 == 0. ----
    L = H * W
    if L % LANES == 0:
        R = L // LANES
        o4 = output.reshape(B, C, R, LANES)
        t4 = target.reshape(B, C, R, LANES)
    else:
        # TODO(synk): ragged H*W needs one padding copy; a copy-free path would
        # require lane masking with a different HBM layout.
        Lp = _round_up(L, LANES)
        R = Lp // LANES
        pad = ((0, 0), (0, 0), (0, Lp - L))
        o4 = jnp.pad(output.reshape(B, C, L), pad).reshape(B, C, R, LANES)
        t4 = jnp.pad(target.reshape(B, C, L), pad).reshape(B, C, R, LANES)

    # ---- Tile sizing: ~max_block_bytes per input block, balanced steps. ----
    max_tile_rows = max(
        sublane, (max_block_bytes // (C * LANES * itemsize)) // sublane * sublane)
    if R <= max_tile_rows:
        tile_rows = R                      # single step, full extent (always legal)
    else:
        n_steps_target = pl.cdiv(R, max_tile_rows)
        tile_rows = _round_up(pl.cdiv(R, n_steps_target), sublane)
        tile_rows = min(tile_rows, (R // sublane) * sublane)
    steps = pl.cdiv(R, tile_rows)
    ragged = (R % tile_rows) != 0
    do_fold = (tile_rows % 8 == 0) and (tile_rows > 8)
    acc_rows = 8 if (tile_rows % 8 == 0) else tile_rows

    # ---- VMEM budget, derived per TPU generation. ----
    block_bytes = C * tile_rows * LANES * itemsize
    acc_bytes = 3 * acc_rows * LANES * 4
    vmem_need = 2 * 2 * block_bytes + acc_bytes + 2 * 3 * LANES * 4
    try:
        vmem_cap = int(pltpu.get_tpu_info().vmem_capacity_bytes)
    except Exception:
        vmem_cap = 64 << 20                # conservative (v7x per-core VMEM)
    vmem_limit = int(min(max(3 * vmem_need, 32 << 20), int(0.75 * vmem_cap)))

    kernel = _make_kernel(C, tile_rows, R, ragged, do_fold)

    # Grid: batch (parallel, feeds both TensorCores on v7x) x row-tiles
    # (arbitrary, accumulator persists).
    # TODO(synk): for B == 1 on v7x, split the row axis into a size-2 leading
    # parallel axis so both cores are used.
    partials = pl.pallas_call(
        kernel,
        out_shape=jax.ShapeDtypeStruct((B, 3, LANES), jnp.float32),
        grid_spec=pltpu.PrefetchScalarGridSpec(
            num_scalar_prefetch=0,
            grid=(B, steps),
            in_specs=[
                pl.BlockSpec((1, C, tile_rows, LANES), lambda b, j: (b, 0, j, 0)),
                pl.BlockSpec((1, C, tile_rows, LANES), lambda b, j: (b, 0, j, 0)),
            ],
            out_specs=pl.BlockSpec((1, 3, LANES), lambda b, j: (b, 0, 0)),
            scratch_shapes=[pltpu.VMEM((3, acc_rows, LANES), jnp.float32)],
        ),
        compiler_params=pltpu.CompilerParams(
            dimension_semantics=("parallel", "arbitrary"),
            vmem_limit_bytes=vmem_limit,
        ),
    )(o4, t4)

    sums = jnp.sum(partials, axis=(0, 2))   # (3,) tiny final reduce in XLA

    n_all = jnp.float32(B * C * H * W)
    n_bhw = jnp.float32(B * H * W)

    data_loss = sums[0] / n_all        # mean |output - target|
    fusion_loss = sums[1] / n_bhw      # mean |output[:,0] + output[:,1]|
    epevalue = sums[2] / n_bhw         # mean_{b,h,w} ||target - output||_2 over C

    lossvalue = data_loss + fusion_param * fusion_loss
    return [lossvalue, epevalue]


def _mv_loss_ref(output, target, fusion_param=0.25):
    """Pure-JAX reference for correctness check."""
    o = output.astype(jnp.float32)
    t = target.astype(jnp.float32)
    data_loss = jnp.mean(jnp.abs(o - t))
    fusion_loss = jnp.mean(jnp.abs(o[:, 0, :, :] + o[:, 1, :, :]))
    lossvalue = data_loss + fusion_param * fusion_loss
    epevalue = jnp.mean(jnp.sqrt(jnp.sum((t - o) ** 2, axis=1)))
    return [lossvalue, epevalue]


if __name__ == "__main__":
    # MvLoss has no learnable parameters; nothing to initialize.
    key = jax.random.PRNGKey(0)

    # Case 1: small flow-like tensor (single-step, full-extent tile path).
    k1, k2, k3, k4 = jax.random.split(key, 4)
    B, C, H, W = 2, 2, 16, 16
    output = jax.random.normal(k1, (B, C, H, W), dtype=jnp.float32)
    target = jax.random.normal(k2, (B, C, H, W), dtype=jnp.float32)

    lossvalue, epevalue = mv_loss(output, target, fusion_param=0.25)
    jax.block_until_ready(lossvalue)
    jax.block_until_ready(epevalue)
    ref_loss, ref_epe = _mv_loss_ref(output, target, fusion_param=0.25)
    assert jnp.allclose(lossvalue, ref_loss, rtol=1e-5, atol=1e-5), (lossvalue, ref_loss)
    assert jnp.allclose(epevalue, ref_epe, rtol=1e-5, atol=1e-5), (epevalue, ref_epe)

    # Case 2: force the multi-step + folded-accumulator + ragged-masked path
    # by shrinking the block budget (still a small tensor).
    B2, C2, H2, W2 = 1, 2, 40, 64   # H*W = 2560 -> 20 row-groups of 128 lanes
    output2 = jax.random.normal(k3, (B2, C2, H2, W2), dtype=jnp.float32)
    target2 = jax.random.normal(k4, (B2, C2, H2, W2), dtype=jnp.float32)

    loss2, epe2 = mv_loss(output2, target2, fusion_param=0.25, max_block_bytes=8192)
    jax.block_until_ready(loss2)
    jax.block_until_ready(epe2)
    ref_loss2, ref_epe2 = _mv_loss_ref(output2, target2, fusion_param=0.25)
    assert jnp.allclose(loss2, ref_loss2, rtol=1e-5, atol=1e-5), (loss2, ref_loss2)
    assert jnp.allclose(epe2, ref_epe2, rtol=1e-5, atol=1e-5), (epe2, ref_epe2)

    print("KERNEL_OK")
</pallas_src>

<mosaic_0001>
module attributes {stable_mosaic.version = 11 : i64} {
  func.func @kernel(%arg0: i32, %arg1: i32, %arg2: memref<1x2x2x128xf32, #tpu.memory_space<vmem>>, %arg3: memref<1x2x2x128xf32, #tpu.memory_space<vmem>>, %arg4: memref<1x3x128xf32, #tpu.memory_space<vmem>>, %arg5: memref<3x2x128xf32, #tpu.memory_space<vmem>>) attributes {dimension_semantics = [#tpu.dimension_semantics<parallel>, #tpu.dimension_semantics<arbitrary>], iteration_bounds = array<i64: 2, 1>, scalar_prefetch = 0 : i64, scratch_operands = 1 : i64, tpu.core_type = #tpu.core_type<tc>, window_params = [{transform_indices = @transform_0, window_bounds = array<i64: 1, 2, 2, 128>}, {transform_indices = @transform_1, window_bounds = array<i64: 1, 2, 2, 128>}, {transform_indices = @transform_2, window_bounds = array<i64: 1, 3, 128>}]} {
    %c0_i32 = arith.constant 0 : i32
    %0 = arith.cmpi eq, %arg1, %c0_i32 : i32
    %1 = arith.extui %0 : i1 to i32
    %c0_i32_0 = arith.constant 0 : i32
    %2 = arith.cmpi ne, %1, %c0_i32_0 : i32
    scf.if %2 {
      %cst_27 = arith.constant 0.000000e+00 : f32
      %40 = vector.broadcast %cst_27 : f32 to vector<3x2x128xf32>
      %c0_28 = arith.constant 0 : index
      %c0_29 = arith.constant 0 : index
      %c0_30 = arith.constant 0 : index
      %41 = vector.load %arg5[%c0_28, %c0_29, %c0_30] : memref<3x2x128xf32, #tpu.memory_space<vmem>>, vector<3x2x128xf32>
      tpu.vector_store %arg5[%c0_28, %c0_29, %c0_30], %40 {strides = array<i32>} : memref<3x2x128xf32, #tpu.memory_space<vmem>>, vector<3x2x128xf32>,
    } else {
    }
    %c0 = arith.constant 0 : index
    %c0_1 = arith.constant 0 : index
    %c0_2 = arith.constant 0 : index
    %c0_3 = arith.constant 0 : index
    %3 = vector.load %arg2[%c0, %c0_1, %c0_2, %c0_3] : memref<1x2x2x128xf32, #tpu.memory_space<vmem>>, vector<1x2x2x128xf32>
    %4 = vector.shape_cast %3 : vector<1x2x2x128xf32> to vector<2x2x128xf32>
    %c0_4 = arith.constant 0 : index
    %c0_5 = arith.constant 0 : index
    %c0_6 = arith.constant 0 : index
    %c0_7 = arith.constant 0 : index
    %5 = vector.load %arg3[%c0_4, %c0_5, %c0_6, %c0_7] : memref<1x2x2x128xf32, #tpu.memory_space<vmem>>, vector<1x2x2x128xf32>
    %6 = vector.shape_cast %5 : vector<1x2x2x128xf32> to vector<2x2x128xf32>
    %7 = arith.subf %6, %4 : vector<2x2x128xf32>
    %8 = math.absf %7 : vector<2x2x128xf32>
    %cst = arith.constant dense<0.000000e+00> : vector<2x128xf32>
    %9 = vector.multi_reduction <add>, %8, %cst [0] : vector<2x2x128xf32> to vector<2x128xf32>
    %10 = vector.extract_strided_slice %4 {offsets = [0, 0, 0], sizes = [1, 2, 128], strides = [1, 1, 1]} : vector<2x2x128xf32> to vector<1x2x128xf32>
    %11 = vector.shape_cast %10 : vector<1x2x128xf32> to vector<2x128xf32>
    %12 = vector.extract_strided_slice %4 {offsets = [1, 0, 0], sizes = [1, 2, 128], strides = [1, 1, 1]} : vector<2x2x128xf32> to vector<1x2x128xf32>
    %13 = vector.shape_cast %12 : vector<1x2x128xf32> to vector<2x128xf32>
    %14 = arith.addf %11, %13 : vector<2x128xf32>
    %15 = math.absf %14 : vector<2x128xf32>
    %16 = arith.mulf %7, %7 : vector<2x2x128xf32>
    %cst_8 = arith.constant dense<0.000000e+00> : vector<2x128xf32>
    %17 = vector.multi_reduction <add>, %16, %cst_8 [0] : vector<2x2x128xf32> to vector<2x128xf32>
    %18 = math.sqrt %17 : vector<2x128xf32>
    %c0_9 = arith.constant 0 : index
    %c0_10 = arith.constant 0 : index
    %c0_11 = arith.constant 0 : index
    %19 = vector.load %arg5[%c0_9, %c0_10, %c0_11] : memref<3x2x128xf32, #tpu.memory_space<vmem>>, vector<1x2x128xf32>
    %20 = vector.shape_cast %19 : vector<1x2x128xf32> to vector<2x128xf32>
    %21 = arith.addf %20, %9 : vector<2x128xf32>
    %c0_12 = arith.constant 0 : index
    %c0_13 = arith.constant 0 : index
    %c0_14 = arith.constant 0 : index
    %22 = vector.load %arg5[%c0_12, %c0_13, %c0_14] : memref<3x2x128xf32, #tpu.memory_space<vmem>>, vector<1x2x128xf32>
    %23 = vector.shape_cast %22 : vector<1x2x128xf32> to vector<2x128xf32>
    %24 = vector.shape_cast %21 : vector<2x128xf32> to vector<1x2x128xf32>
    tpu.vector_store %arg5[%c0_12, %c0_13, %c0_14], %24 {strides = array<i32>} : memref<3x2x128xf32, #tpu.memory_space<vmem>>, vector<1x2x128xf32>,
    %c1 = arith.constant 1 : index
    %c0_15 = arith.constant 0 : index
    %c0_16 = arith.constant 0 : index
    %25 = vector.load %arg5[%c1, %c0_15, %c0_16] : memref<3x2x128xf32, #tpu.memory_space<vmem>>, vector<1x2x128xf32>
    %26 = vector.shape_cast %25 : vector<1x2x128xf32> to vector<2x128xf32>
    %27 = arith.addf %26, %15 : vector<2x128xf32>
    %c1_17 = arith.constant 1 : index
    %c0_18 = arith.constant 0 : index
    %c0_19 = arith.constant 0 : index
    %28 = vector.load %arg5[%c1_17, %c0_18, %c0_19] : memref<3x2x128xf32, #tpu.memory_space<vmem>>, vector<1x2x128xf32>
    %29 = vector.shape_cast %28 : vector<1x2x128xf32> to vector<2x128xf32>
    %30 = vector.shape_cast %27 : vector<2x128xf32> to vector<1x2x128xf32>
    tpu.vector_store %arg5[%c1_17, %c0_18, %c0_19], %30 {strides = array<i32>} : memref<3x2x128xf32, #tpu.memory_space<vmem>>, vector<1x2x128xf32>,
    %c2 = arith.constant 2 : index
    %c0_20 = arith.constant 0 : index
    %c0_21 = arith.constant 0 : index
    %31 = vector.load %arg5[%c2, %c0_20, %c0_21] : memref<3x2x128xf32, #tpu.memory_space<vmem>>, vector<1x2x128xf32>
    %32 = vector.shape_cast %31 : vector<1x2x128xf32> to vector<2x128xf32>
    %33 = arith.addf %32, %18 : vector<2x128xf32>
    %c2_22 = arith.constant 2 : index
    %c0_23 = arith.constant 0 : index
    %c0_24 = arith.constant 0 : index
    %34 = vector.load %arg5[%c2_22, %c0_23, %c0_24] : memref<3x2x128xf32, #tpu.memory_space<vmem>>, vector<1x2x128xf32>
    %35 = vector.shape_cast %34 : vector<1x2x128xf32> to vector<2x128xf32>
    %36 = vector.shape_cast %33 : vector<2x128xf32> to vector<1x2x128xf32>
    tpu.vector_store %arg5[%c2_22, %c0_23, %c0_24], %36 {strides = array<i32>} : memref<3x2x128xf32, #tpu.memory_space<vmem>>, vector<1x2x128xf32>,
    %c0_i32_25 = arith.constant 0 : i32
    %37 = arith.cmpi eq, %arg1, %c0_i32_25 : i32
    %38 = arith.extui %37 : i1 to i32
    %c0_i32_26 = arith.constant 0 : i32
    %39 = arith.cmpi ne, %38, %c0_i32_26 : i32
    scf.if %39 {
      %c0_27 = arith.constant 0 : index
      %c0_28 = arith.constant 0 : index
      %c0_29 = arith.constant 0 : index
      %40 = vector.load %arg5[%c0_27, %c0_28, %c0_29] : memref<3x2x128xf32, #tpu.memory_space<vmem>>, vector<1x2x128xf32>
      %41 = vector.shape_cast %40 : vector<1x2x128xf32> to vector<2x128xf32>
      %cst_30 = arith.constant dense<0.000000e+00> : vector<128xf32>
      %42 = vector.multi_reduction <add>, %41, %cst_30 [0] : vector<2x128xf32> to vector<128xf32>
      %43 = vector.shape_cast %42 : vector<128xf32> to vector<1x128xf32>
      %c0_31 = arith.constant 0 : index
      %c0_32 = arith.constant 0 : index
      %c0_33 = arith.constant 0 : index
      %44 = vector.load %arg4[%c0_31, %c0_32, %c0_33] : memref<1x3x128xf32, #tpu.memory_space<vmem>>, vector<1x1x128xf32>
      %45 = vector.shape_cast %44 : vector<1x1x128xf32> to vector<1x128xf32>
      %46 = vector.shape_cast %43 : vector<1x128xf32> to vector<1x1x128xf32>
      tpu.vector_store %arg4[%c0_31, %c0_32, %c0_33], %46 {strides = array<i32>} : memref<1x3x128xf32, #tpu.memory_space<vmem>>, vector<1x1x128xf32>,
      %c1_34 = arith.constant 1 : index
      %c0_35 = arith.constant 0 : index
      %c0_36 = arith.constant 0 : index
      %47 = vector.load %arg5[%c1_34, %c0_35, %c0_36] : memref<3x2x128xf32, #tpu.memory_space<vmem>>, vector<1x2x128xf32>
      %48 = vector.shape_cast %47 : vector<1x2x128xf32> to vector<2x128xf32>
      %cst_37 = arith.constant dense<0.000000e+00> : vector<128xf32>
      %49 = vector.multi_reduction <add>, %48, %cst_37 [0] : vector<2x128xf32> to vector<128xf32>
      %50 = vector.shape_cast %49 : vector<128xf32> to vector<1x128xf32>
      %c0_38 = arith.constant 0 : index
      %c1_39 = arith.constant 1 : index
      %c0_40 = arith.constant 0 : index
      %51 = vector.load %arg4[%c0_38, %c1_39, %c0_40] : memref<1x3x128xf32, #tpu.memory_space<vmem>>, vector<1x1x128xf32>
      %52 = vector.shape_cast %51 : vector<1x1x128xf32> to vector<1x128xf32>
      %53 = vector.shape_cast %50 : vector<1x128xf32> to vector<1x1x128xf32>
      tpu.vector_store %arg4[%c0_38, %c1_39, %c0_40], %53 {strides = array<i32>} : memref<1x3x128xf32, #tpu.memory_space<vmem>>, vector<1x1x128xf32>,
      %c2_41 = arith.constant 2 : index
      %c0_42 = arith.constant 0 : index
      %c0_43 = arith.constant 0 : index
      %54 = vector.load %arg5[%c2_41, %c0_42, %c0_43] : memref<3x2x128xf32, #tpu.memory_space<vmem>>, vector<1x2x128xf32>
      %55 = vector.shape_cast %54 : vector<1x2x128xf32> to vector<2x128xf32>
      %cst_44 = arith.constant dense<0.000000e+00> : vector<128xf32>
      %56 = vector.multi_reduction <add>, %55, %cst_44 [0] : vector<2x128xf32> to vector<128xf32>
      %57 = vector.shape_cast %56 : vector<128xf32> to vector<1x128xf32>
      %c0_45 = arith.constant 0 : index
      %c2_46 = arith.constant 2 : index
      %c0_47 = arith.constant 0 : index
      %58 = vector.load %arg4[%c0_45, %c2_46, %c0_47] : memref<1x3x128xf32, #tpu.memory_space<vmem>>, vector<1x1x128xf32>
      %59 = vector.shape_cast %58 : vector<1x1x128xf32> to vector<1x128xf32>
      %60 = vector.shape_cast %57 : vector<1x128xf32> to vector<1x1x128xf32>
      tpu.vector_store %arg4[%c0_45, %c2_46, %c0_47], %60 {strides = array<i32>} : memref<1x3x128xf32, #tpu.memory_space<vmem>>, vector<1x1x128xf32>,
    } else {
    }
    return
  }
  func.func @transform_0(%arg0: i32, %arg1: i32) -> (i32, i32, i32, i32) {
    %c0_i32 = arith.constant 0 : i32
    %c0_i32_0 = arith.constant 0 : i32
    %c0_i32_1 = arith.constant 0 : i32
    return %arg0, %c0_i32, %arg1, %c0_i32_0 : i32, i32, i32, i32
  }
  func.func @transform_1(%arg0: i32, %arg1: i32) -> (i32, i32, i32, i32) {
    %c0_i32 = arith.constant 0 : i32
    %c0_i32_0 = arith.constant 0 : i32
    %c0_i32_1 = arith.constant 0 : i32
    return %arg0, %c0_i32, %arg1, %c0_i32_0 : i32, i32, i32, i32
  }
  func.func @transform_2(%arg0: i32, %arg1: i32) -> (i32, i32, i32) {
    %c0_i32 = arith.constant 0 : i32
    %c0_i32_0 = arith.constant 0 : i32
    %c0_i32_1 = arith.constant 0 : i32
    return %arg0, %c0_i32, %c0_i32_0 : i32, i32, i32
  }
}

</mosaic_0001>

<llo_original>
// kernel: tpu_custom_call.1
$region0: #{tpu_custom_call.1}
  #allocation0 [shape = 'u32[]', space=smem, size = 0x4, offset = 0x4, fixed_abs, tag = 'smem constant byte address 0x4 - core index']
  #allocation1 [shape = 'u32[144,128]{1,0:T(1,128)}', space=vmem, size = 0x12000, scoped, tag = 'internal scratch']
  #allocation2 [shape = 'f32[3,2,128]{2,1,0:T(2,128)}', space=vmem, size = 0xc00, scoped, tag = 'scratch operand']
  %s0 = inlined_call_operand.hbm [shape: f32[2,2,2,128], index: 0, kind: input, shape index: {}]
  %s1 = inlined_call_operand.hbm [shape: f32[2,2,2,128], index: 1, kind: input, shape index: {}]
  %s2 = inlined_call_operand.vmem [shape: f32[2,3,128], index: 2, kind: output, shape index: {}]
  %s3 = sld [smem:[#allocation0]]
  $region57: #{tpu_custom_call.1} parent=0
    _
  %s5 = ssub.s32 1, %s3
  %s6 = scalar_select 0, %s5, %s3
  $region1: #{tpu_custom_call.1} parent=0
    #allocation3 [shape = 'u8[4096]{0}', space=vmem, size = 0x1000, scoped, tag = 'input window, operand 0']
    #allocation4 [shape = 's32[2]{0}', space=sflag, size = 0x8, scoped, tag = 'scoped memory for tpu_custom_call.1']
    #allocation5 [shape = 'u8[4096]{0}', space=vmem, size = 0x1000, scoped, tag = 'input window, operand 1']
    #allocation6 [shape = 's32[2]{0}', space=sflag, size = 0x8, scoped, tag = 'scoped memory for tpu_custom_call.1']
    %7 = vsyncpa [#allocation4], 0
    %s8 = scalar_lea.sflag [#allocation4], 1
    %9 = vsyncpa %s8, 0
    %10 = vsyncpa [#allocation6], 0
    %s11 = scalar_lea.sflag [#allocation6], 1
    %12 = vsyncpa %s11, 0
    loop: start=0, step=1, limit=4
    $region2: #{tpu_custom_call.1} parent=1 // loop_pre_header
      _
    $region3: #{tpu_custom_call.1} parent=1 // loop_header
      %s14 = sphi 0, %s18
      %p15 = scmp.ge.s32.totalorder %s14, 4
      %s21 = sphi 0, %s33
      %s22 = sphi 0, %s29
      %s23 = sphi 0, %s21
      %s24 = sphi 0, %s22
      %s25 = sphi 0, %s23
      %s26 = sphi 0, %s24
      %s38 = sphi 0, %s40
      %s41 = sphi 0, %s38
      %s42 = sphi 0, %s41
      %s58 = sphi 0, %s42
      %s66 = sphi 0, %s68
      %s69 = sphi 0, %s66
      %s70 = sphi 0, %s69
      %s86 = sphi 0, %s70
      %s92 = sphi 0, %s94
      %s95 = sphi 0, %s92
      %s96 = sphi 0, %s95
      %s112 = sphi 0, %s96
    $region4: #{tpu_custom_call.1} parent=1 // loop_header_branch
      %17 = sbr.rel (%p15) target = $region8
    $region5: #{tpu_custom_call.1} parent=1 // loop_body
      %s19 = ssub.s32 %s14, 1
      %s20 = ssub.s32 %s14, 2
      %s27 = sadd.s32 1, %s22
      %p28 = scmp.ge.s32.totalorder %s27, 1
      %s29 = scalar_select %p28, 0, %s27
      %s30 = sadd.s32 1, %s21
      %s31 = scalar_select %p28, %s30, %s21
      %p32 = scmp.ge.s32.totalorder %s31, 2
      %s33 = scalar_select %p32, 0, %s31
      %s34 = ssub.s32 %s21, %s33
      %s35 = ssub.s32 %s22, %s29
      %s36 = sor.u32 %s34, %s35
      %p37 = scmp.eq.s32.totalorder %s36, 0
      %s39 = sadd.s32 %s38, 1
      %s40 = scalar_select %p37, %s38, %s39
      %p43 = pneg %p37
      %p44 = scmp.eq.s32.totalorder %s14, 1
      %p45 = por %p43, %p44
      %p46 = scmp.ne.s32.totalorder %s38, %s41
      %p47 = scmp.eq.s32.totalorder %s14, 0
      %p48 = por %p46, %p47
      %p49 = scmp.ne.s32.totalorder %s38, %s41
      %p50 = scmp.eq.s32.totalorder %s19, 1
      %p51 = por %p49, %p50
      %p52 = scmp.ne.s32.totalorder %s41, %s42
      %p53 = scmp.eq.s32.totalorder %s19, 0
      %p54 = por %p52, %p53
      %p55 = scmp.ne.s32.totalorder %s41, %s42
      %p56 = scmp.eq.s32.totalorder %s20, 1
      %p57 = por %p55, %p56
      %p59 = scmp.ne.s32.totalorder %s42, %s58
      %p60 = scmp.eq.s32.totalorder %s20, 0
      %p61 = por %p59, %p60
      %s62 = ssub.s32 %s21, %s33
      %s63 = ssub.s32 %s22, %s29
      %s64 = sor.u32 %s62, %s63
      %p65 = scmp.eq.s32.totalorder %s64, 0
      %s67 = sadd.s32 %s66, 1
      %s68 = scalar_select %p65, %s66, %s67
      %p71 = pneg %p65
      %p72 = scmp.eq.s32.totalorder %s14, 1
      %p73 = por %p71, %p72
      %p74 = scmp.ne.s32.totalorder %s66, %s69
      %p75 = scmp.eq.s32.totalorder %s14, 0
      %p76 = por %p74, %p75
      %p77 = scmp.ne.s32.totalorder %s66, %s69
      %p78 = scmp.eq.s32.totalorder %s19, 1
      %p79 = por %p77, %p78
      %p80 = scmp.ne.s32.totalorder %s69, %s70
      %p81 = scmp.eq.s32.totalorder %s19, 0
      %p82 = por %p80, %p81
      %p83 = scmp.ne.s32.totalorder %s69, %s70
      %p84 = scmp.eq.s32.totalorder %s20, 1
      %p85 = por %p83, %p84
      %p87 = scmp.ne.s32.totalorder %s70, %s86
      %p88 = scmp.eq.s32.totalorder %s20, 0
      %p89 = por %p87, %p88
      %s90 = ssub.s32 %s21, %s33
      %p91 = scmp.eq.s32.totalorder %s90, 0
      %s93 = sadd.s32 %s92, 1
      %s94 = scalar_select %p91, %s92, %s93
      %p97 = pneg %p91
      %p98 = scmp.eq.s32.totalorder %s14, 1
      %p99 = por %p97, %p98
      %p100 = scmp.ne.s32.totalorder %s92, %s95
      %p101 = scmp.eq.s32.totalorder %s14, 0
      %p102 = por %p100, %p101
      %p103 = scmp.ne.s32.totalorder %s92, %s95
      %p104 = scmp.eq.s32.totalorder %s19, 1
      %p105 = por %p103, %p104
      %p106 = scmp.ne.s32.totalorder %s95, %s96
      %p107 = scmp.eq.s32.totalorder %s19, 0
      %p108 = por %p106, %p107
      %p109 = scmp.ne.s32.totalorder %s95, %s96
      %p110 = scmp.eq.s32.totalorder %s20, 1
      %p111 = por %p109, %p110
      %p113 = scmp.ne.s32.totalorder %s96, %s112
      %p114 = scmp.eq.s32.totalorder %s20, 0
      %p115 = por %p113, %p114
      %p116 = scmp.le.s32.totalorder 1, %s14
      %p117 = scmp.lt.s32.totalorder %s14, 3
      %p118 = pnand %p116, %p117
      %p119 = pneg %p118
      // Predicated region
      $region9: #{tpu_custom_call.1} parent=5 // pred_check
        _
      $region10: #{tpu_custom_call.1} parent=5 // pred_check_branch
        %121 = sbr.rel (%p118) target = $region12
      $region11: #{tpu_custom_call.1} parent=5 // pred_region
        %s122 = ssub.s32 %s14, 1
      $region12: #{tpu_custom_call.1} parent=5 // pred_fallthru
        _
      %p123 = scmp.lt.s32.totalorder %s14, 2
      // Predicated region
      $region13: #{tpu_custom_call.1} parent=5 // pred_check
        %p124 = pneg %p123
      $region14: #{tpu_custom_call.1} parent=5 // pred_check_branch
        %126 = sbr.rel (%p124) target = $region16
      $region15: #{tpu_custom_call.1} parent=5 // pred_region
        // Predicated region
        $region17: #{tpu_custom_call.1} parent=15 // pred_check
          %p127 = pneg %p48
        $region18: #{tpu_custom_call.1} parent=15 // pred_check_branch
          %129 = sbr.rel (%p127) target = $region20
        $region19: #{tpu_custom_call.1} parent=15 // pred_region
          %s130 = sand.u32 %s38, 1
          %s131 = scalar_lea.sflag [#allocation4], %s130
          %s132 = sand.u32 %s38, 1
          %s133 = smul.addr %s132, 4
          %s134 = scalar_lea.vmem [#allocation3], %s133
          %s136 = ssub.s32 64, 64
          %137 = vsyncadd %s131, %s136
          %s138 = smul.addr %s21, 2
          %s139 = sadd.s32 %s22, %s138
          %s140 = smul.addr %s139, 32
          %s141 = scalar_lea.hbm %s0, %s140
          %s142 = sshll.u32 %s134, 4
          %s143 = int_to_ptr.vmem [resolvable:$true] %s142
          %148 = dma.hbm_to_vmem [thread:$0]  %s141, 64, %s143, %s131, 32, 32, 2
        $region20: #{tpu_custom_call.1} parent=15 // pred_fallthru
          _
        // Predicated region
        $region21: #{tpu_custom_call.1} parent=15 // pred_check
          %p149 = pneg %p76
        $region22: #{tpu_custom_call.1} parent=15 // pred_check_branch
          %151 = sbr.rel (%p149) target = $region24
        $region23: #{tpu_custom_call.1} parent=15 // pred_region
          %s152 = sand.u32 %s66, 1
          %s153 = scalar_lea.sflag [#allocation6], %s152
          %s154 = sand.u32 %s66, 1
          %s155 = smul.addr %s154, 4
          %s156 = scalar_lea.vmem [#allocation5], %s155
          %s158 = ssub.s32 64, 64
          %159 = vsyncadd %s153, %s158
          %s160 = smul.addr %s21, 2
          %s161 = sadd.s32 %s22, %s160
          %s162 = smul.addr %s161, 32
          %s163 = scalar_lea.hbm %s1, %s162
          %s164 = sshll.u32 %s156, 4
          %s165 = int_to_ptr.vmem [resolvable:$true] %s164
          %170 = dma.hbm_to_vmem [thread:$0]  %s163, 64, %s165, %s153, 32, 32, 2
        $region24: #{tpu_custom_call.1} parent=15 // pred_fallthru
          _
      $region16: #{tpu_custom_call.1} parent=5 // pred_fallthru
        _
      %p171 = scmp.le.s32.totalorder 1, %s14
      %p172 = scmp.lt.s32.totalorder %s14, 3
      %p173 = pnand %p171, %p172
      %p174 = pneg %p173
      // Predicated region
      $region25: #{tpu_custom_call.1} parent=5 // pred_check
        _
      $region26: #{tpu_custom_call.1} parent=5 // pred_check_branch
        %176 = sbr.rel (%p173) target = $region28
      $region27: #{tpu_custom_call.1} parent=5 // pred_region
        %s177 = ssub.s32 %s14, 1
        %s178 = sand.u32 %s41, 1
        %s179 = scalar_lea.sflag [#allocation4], %s178
        %s180 = sand.u32 %s41, 1
        %s181 = smul.addr %s180, 4
        %s182 = scalar_lea.vmem [#allocation3], %s181
        // Predicated region
        $region29: #{tpu_custom_call.1} parent=27 // pred_check
          %p183 = pneg %p54
        $region30: #{tpu_custom_call.1} parent=27 // pred_check_branch
          %185 = sbr.rel (%p183) target = $region32
        $region31: #{tpu_custom_call.1} parent=27 // pred_region
          %186 = dma.done %s179, 64
        $region32: #{tpu_custom_call.1} parent=27 // pred_fallthru
          _
        %s187 = sand.u32 %s69, 1
        %s188 = scalar_lea.sflag [#allocation6], %s187
        %s189 = sand.u32 %s69, 1
        %s190 = smul.addr %s189, 4
        %s191 = scalar_lea.vmem [#allocation5], %s190
        // Predicated region
        $region33: #{tpu_custom_call.1} parent=27 // pred_check
          %p192 = pneg %p82
        $region34: #{tpu_custom_call.1} parent=27 // pred_check_branch
          %194 = sbr.rel (%p192) target = $region36
        $region35: #{tpu_custom_call.1} parent=27 // pred_region
          %195 = dma.done %s188, 64
        $region36: #{tpu_custom_call.1} parent=27 // pred_fallthru
          _
        %s196 = sand.u32 %s41, 1
        %s197 = scalar_lea.sflag [#allocation4], %s196
        %s198 = sand.u32 %s41, 1
        %s199 = smul.addr %s198, 4
        %s200 = scalar_lea.vmem [#allocation3], %s199
        %p201 = pneg %p54
        %p202 = pneg %p51
        %s203 = sand.u32 %s69, 1
        %s204 = scalar_lea.sflag [#allocation6], %s203
        %s205 = sand.u32 %s69, 1
        %s206 = smul.addr %s205, 4
        %s207 = scalar_lea.vmem [#allocation5], %s206
        %p208 = pneg %p82
        %p209 = pneg %p79
        %p210 = pneg %p108
        %p211 = pneg %p105
        %p212 = scmp.lt.s32.totalorder %s23, 1
        %s213 = scalar_select %p212, %s23, 1
        %s214 = smul.addr %s213, 4
        %s215 = scalar_lea.vmem %s2, %s214
        %p216 = scmp.lt.s32.totalorder %s23, 1
        %s217 = scalar_select %p216, %s23, 1
        %s218 = smul.addr %s217, 4
        %s219 = scalar_lea.vmem %s2, %s218
        %p220 = scmp.eq.s32.totalorder %s24, 0
        // Predicated region
        $region37: #{tpu_custom_call.1} parent=27 // pred_check
          %p221 = pneg %p220
        $region38: #{tpu_custom_call.1} parent=27 // pred_check_branch
          %223 = sbr.rel (%p221) target = $region40
        $region39: #{tpu_custom_call.1} parent=27 // pred_region
          %224 = vst [vmem:[#allocation2] sm:$0x3] 0.0
          %225 = vst [vmem:[#allocation2 + $0x2] sm:$0x3] 0.0
          %226 = vst [vmem:[#allocation2 + $0x4] sm:$0x3] 0.0
        $region40: #{tpu_custom_call.1} parent=27 // pred_fallthru
          _
        %v227 = vld [vmem:[%s182] sm:$0x3]
        %v228 = vld [vmem:[%s182 + $0x2] sm:$0x3]
        %v229 = vld [vmem:[%s191] sm:$0x3]
        %v230 = vld [vmem:[%s191 + $0x2] sm:$0x3]
        %v231 = vsub.f32 %v229, %v227
        %v232 = vsub.f32 %v230, %v228
        %v233 = vand.u32 2147483647, %v231
        %v234 = vand.u32 2147483647, %v232
        %vm235 = vcmask 1041408
        %v236 = vsel %vm235, %v233, 0.0
        %v237 = vsel %vm235, %v234, 0.0
        %v238 = vadd.f32 %v236, %v237
        %v239 = vadd.f32 %v227, %v228
        %v240 = vand.u32 2147483647, %v239
        %v241 = vmul.f32 %v231, %v231
        %v242 = vmul.f32 %v232, %v232
        %v243 = vsel %vm235, %v241, 0.0
        %v244 = vsel %vm235, %v242, 0.0
        %v245 = vadd.f32 %v243, %v244
        %v246 = vrsqrt.pop %v245
        %v247 = vmul.f32 %v245, %v246
        %vm248 = vcmp.eq.f32.partialorder %v245, inf
        %v249 = vsel %vm248, %v245, %v247
        %vm250 = vcmp.eq.f32.partialorder %v245, 0.0
        %v251 = vand.u32 %v245, 2147483648
        %v252 = vsel %vm250, %v251, %v249
        %v253 = vld [vmem:[#allocation2] sm:$0x3]
        %v254 = vadd.f32 %v253, %v238
        %255 = vst [vmem:[#allocation2] sm:$0x3] %v254
        %s256 = scalar_lea.vmem [#allocation2], 2
        %v257 = vld [vmem:[%s256] sm:$0x3]
        %v258 = vadd.f32 %v257, %v240
        %259 = vst [vmem:[%s256] sm:$0x3] %v258
        %s260 = scalar_lea.vmem [#allocation2], 4
        %v261 = vld [vmem:[%s260] sm:$0x3]
        %v262 = vadd.f32 %v261, %v252
        %263 = vst [vmem:[%s260] sm:$0x3] %v262
        // Predicated region
        $region41: #{tpu_custom_call.1} parent=27 // pred_check
          %p264 = pneg %p220
        $region42: #{tpu_custom_call.1} parent=27 // pred_check_branch
          %266 = sbr.rel (%p264) target = $region44
        $region43: #{tpu_custom_call.1} parent=27 // pred_region
          %v267 = vld [vmem:[#allocation2] sm:$0x3]
          %v268 = vsel %vm235, %v267, 0.0
          %v269 = vrot.slane %v268, 4
          %v270 = vadd.f32 %v268, %v269
          %v271 = vrot.slane %v270, 2
          %v272 = vadd.f32 %v270, %v271
          %v273 = vrot.slane %v272, 1
          %v274 = vadd.f32 %v272, %v273
          %275 = vst [vmem:[%s219] sm:$0x1] %v274
          %v276 = vld [vmem:[%s256] sm:$0x3]
          %v277 = vsel %vm235, %v276, 0.0
          %v278 = vrot.slane %v277, 4
          %v279 = vadd.f32 %v277, %v278
          %v280 = vrot.slane %v279, 2
          %v281 = vadd.f32 %v279, %v280
          %v282 = vrot.slane %v281, 1
          %v283 = vadd.f32 %v281, %v282
          %284 = vst [vmem:[%s219 + $0x1] sm:$0x1] %v283
          %v285 = vld [vmem:[%s260] sm:$0x3]
          %v286 = vsel %vm235, %v285, 0.0
          %v287 = vrot.slane %v286, 4
          %v288 = vadd.f32 %v286, %v287
          %v289 = vrot.slane %v288, 2
          %v290 = vadd.f32 %v288, %v289
          %v291 = vrot.slane %v290, 1
          %v292 = vadd.f32 %v290, %v291
          %293 = vst [vmem:[%s219 + $0x2] sm:$0x1] %v292
        $region44: #{tpu_custom_call.1} parent=27 // pred_fallthru
          _
        %p294 = scmp.lt.s32.totalorder %s23, 1
        %s295 = scalar_select %p294, %s23, 1
        %s296 = smul.addr %s295, 4
        %s297 = scalar_lea.vmem %s2, %s296
        // Predicated region
        $region45: #{tpu_custom_call.1} parent=27 // pred_check
          %p298 = pneg %p105
        $region46: #{tpu_custom_call.1} parent=27 // pred_check_branch
          %300 = sbr.rel (%p298) target = $region48
        $region47: #{tpu_custom_call.1} parent=27 // pred_region
          _
        $region48: #{tpu_custom_call.1} parent=27 // pred_fallthru
          _
      $region28: #{tpu_custom_call.1} parent=5 // pred_fallthru
        _
      %p301 = scmp.le.s32.totalorder 2, %s14
      // Predicated region
      $region49: #{tpu_custom_call.1} parent=5 // pred_check
        %p302 = pneg %p301
      $region50: #{tpu_custom_call.1} parent=5 // pred_check_branch
        %304 = sbr.rel (%p302) target = $region52
      $region51: #{tpu_custom_call.1} parent=5 // pred_region
        %s305 = ssub.s32 %s14, 2
        // Predicated region
        $region53: #{tpu_custom_call.1} parent=51 // pred_check
          %p306 = pneg %p111
        $region54: #{tpu_custom_call.1} parent=51 // pred_check_branch
          %308 = sbr.rel (%p306) target = $region56
        $region55: #{tpu_custom_call.1} parent=51 // pred_region
          %p309 = scmp.lt.s32.totalorder %s25, 1
          %s310 = scalar_select %p309, %s25, 1
          %s311 = smul.addr %s310, 4
          %s312 = scalar_lea.vmem %s2, %s311
        $region56: #{tpu_custom_call.1} parent=51 // pred_fallthru
          _
      $region52: #{tpu_custom_call.1} parent=5 // pred_fallthru
        _
    $region6: #{tpu_custom_call.1} parent=1 // loop_footer
      %s18 = sadd.s32 1, %s14
    $region7: #{tpu_custom_call.1} parent=1 // loop_footer_branch
      %13 = sbr.rel target = $region3
    $region8: #{tpu_custom_call.1} parent=1 // loop_exit
      _
    %313 = vsyncpa [#allocation4], 1
    %s314 = scalar_lea.sflag [#allocation4], 1
    %315 = vsyncpa %s314, 1
    %316 = vsyncpa [#allocation6], 1
    %s317 = scalar_lea.sflag [#allocation6], 1
    %318 = vsyncpa %s317, 1

</llo_original>
